<compile_context>
chip_gen: v7x
topology: tpu7x:2x2x1
jax: 0.10.0
libtpu: 0.0.40
codegen_flags: <defaults>
</compile_context>

<pallas_src>
import jax
import jax.numpy as jnp
from jax.experimental import pallas as pl
from jax.experimental.pallas import tpu as pltpu


_CHUNK = 512  # lanes per in-kernel chunk; keeps h=[32,chunk] (16 f32 vregs) resident


def _round_up(x, m):
    return ((x + m - 1) // m) * m


def _choose_tiling(n, tile_n_max):
    """Pick (tile, grid) with tile a multiple of 128 (and of _CHUNK when >= _CHUNK),
    at least 2 grid steps for N > 128 (v7x dual-TC), and minimal tail padding."""
    n128 = _round_up(max(n, 1), 128)
    tile_cap = max(128, min(tile_n_max, n128))
    grid_n = -(-n128 // tile_cap)          # cdiv
    if grid_n == 1 and n128 >= 256:
        grid_n = 2                          # keep both v7x TensorCores busy
    tile = -(-n128 // grid_n)               # cdiv
    quantum = _CHUNK if tile >= _CHUNK else 128
    tile = _round_up(tile, quantum)
    return tile, grid_n


def _meta_mlp_kernel(x_ref, w1_ref, b1_ref, w2_ref, b2_ref, out_ref):
    # x:   [2, T]   (batch on lanes)
    # w1:  [32, 2]  (PyTorch Linear(2,32).weight layout, [out, in])
    # b1:  [32, 1]
    # w2:  [32, 3]  ([in, out] so columns slice as [32, 1] sublane vectors)
    # b2:  [3, 1]
    # out: [3, T]   (merged lane-dense output block)
    #
    # Hoist all weight/bias column splats out of the chunk loop (no CSE of
    # broadcast_in_dim in JAX).
    w1c0 = w1_ref[:, 0:1]          # [32, 1]
    w1c1 = w1_ref[:, 1:2]          # [32, 1]
    b1 = b1_ref[...]               # [32, 1]
    w2c0 = w2_ref[:, 0:1]          # [32, 1]
    w2c1 = w2_ref[:, 1:2]          # [32, 1]
    w2c2 = w2_ref[:, 2:3]          # [32, 1]
    b2 = b2_ref[...]               # [3, 1]

    tile = x_ref.shape[1]
    chunk = min(_CHUNK, tile)
    n_chunks = tile // chunk       # exact by construction in the wrapper

    # Static trip count -> fully unrolled at trace time; h=[32, chunk] lives in
    # vregs for the whole chunk (no VMEM round-trip of the hidden activation).
    for c in range(n_chunks):
        lo = c * chunk
        hi = lo + chunk
        x0 = x_ref[0:1, lo:hi]     # [1, chunk]
        x1 = x_ref[1:2, lo:hi]     # [1, chunk]

        # Layer 1 as VPU broadcast MACs (K=2 matmul would waste the MXU).
        h = jnp.maximum(w1c0 * x0 + w1c1 * x1 + b1, 0.0)   # [32, chunk]

        # Layer 2: three sublane reductions over the 32 hidden units.
        # (jnp.sum(axis=0) is expected to land on the XLU, which has slack.)
        y0 = jnp.sum(w2c0 * h, axis=0, keepdims=True) + b2[0:1, :]
        y1 = jnp.sum(w2c1 * h, axis=0, keepdims=True) + b2[1:2, :]
        y2 = jnp.sum(w2c2 * h, axis=0, keepdims=True) + b2[2:3, :]

        out_ref[0:1, lo:hi] = y0.astype(out_ref.dtype)
        out_ref[1:2, lo:hi] = y1.astype(out_ref.dtype)
        out_ref[2:3, lo:hi] = y2.astype(out_ref.dtype)


def meta_model_forward(boundary, w1, b1, w2, b2, *, tile_n=32768):
    """Pallas implementation of MetaModel.forward.

    boundary: [N, 2] float32
    w1: [32, 2], b1: [32], w2: [3, 32], b2: [3]  (PyTorch nn.Linear layouts)
    returns (W1, W2, b): each [N, 1] float32
    """
    n = boundary.shape[0]
    hidden = w1.shape[0]
    n_out = w2.shape[0]

    tile, grid_n = _choose_tiling(n, tile_n)
    n_pad = tile * grid_n

    # Layout plumbing (fused into a single pre-pass under jit): batch onto the
    # lane axis, weights into kernel-friendly orientations.
    x_t = boundary.T                        # [2, N]
    if n_pad != n:
        x_t = jnp.pad(x_t, ((0, 0), (0, n_pad - n)))
    b1c = b1.reshape(hidden, 1)             # [32, 1]
    w2io = w2.T                             # [32, 3]
    b2c = b2.reshape(n_out, 1)              # [3, 1]

    def const_spec(shape):
        # Same block every grid step -> weights stay resident in VMEM (1 DMA).
        return pl.BlockSpec(shape, lambda i: (0, 0))

    out = pl.pallas_call(
        _meta_mlp_kernel,
        out_shape=jax.ShapeDtypeStruct((n_out, n_pad), jnp.float32),
        grid_spec=pltpu.PrefetchScalarGridSpec(
            num_scalar_prefetch=0,
            grid=(grid_n,),
            in_specs=[
                pl.BlockSpec((2, tile), lambda i: (0, i)),   # x (tiled on lanes)
                const_spec((hidden, 2)),                     # w1
                const_spec((hidden, 1)),                     # b1
                const_spec((hidden, n_out)),                 # w2 (in, out)
                const_spec((n_out, 1)),                      # b2
            ],
            out_specs=pl.BlockSpec((n_out, tile), lambda i: (0, i)),  # merged [3, T]
        ),
        compiler_params=pltpu.CompilerParams(
            # Independent batch tiles: shard the grid across both v7x TCs.
            dimension_semantics=("parallel",),
        ),
    )(x_t, w1, b1c, w2io, b2c)

    # Row slices are contiguous; [1, n] -> [n, 1] is layout-identical (free).
    # Under jit these fuse into a single epilogue pass.
    W1 = out[0, :n].reshape(n, 1)
    W2 = out[1, :n].reshape(n, 1)
    b = out[2, :n].reshape(n, 1)
    return W1, W2, b


# Jitted entry point: fuses the transpose+pad pre-pass and the output
# slice/reshape epilogue around the Pallas custom call.
meta_model_forward_jit = jax.jit(meta_model_forward, static_argnames=("tile_n",))


def _init_params(key):
    """Deterministic init matching nn.Linear(2,32) / nn.Linear(32,3) layouts."""
    k1, k2, k3, k4 = jax.random.split(key, 4)
    bound1 = 1.0 / jnp.sqrt(2.0)
    bound2 = 1.0 / jnp.sqrt(32.0)
    w1 = jax.random.uniform(k1, (32, 2), jnp.float32, -bound1, bound1)
    b1 = jax.random.uniform(k2, (32,), jnp.float32, -bound1, bound1)
    w2 = jax.random.uniform(k3, (3, 32), jnp.float32, -bound2, bound2)
    b2 = jax.random.uniform(k4, (3,), jnp.float32, -bound2, bound2)
    return w1, b1, w2, b2


def _check(n, key, params):
    w1, b1, w2, b2 = params
    boundary = jax.random.normal(key, (n, 2), jnp.float32)
    W1, W2, b = meta_model_forward_jit(boundary, w1, b1, w2, b2)
    jax.block_until_ready((W1, W2, b))

    # Pure-JAX reference (PyTorch semantics: x @ W.T + b).
    h_ref = jnp.maximum(boundary @ w1.T + b1, 0.0)
    out_ref = h_ref @ w2.T + b2
    assert W1.shape == (n, 1) and W2.shape == (n, 1) and b.shape == (n, 1)
    assert jnp.allclose(W1, out_ref[:, 0:1], atol=1e-5, rtol=1e-5)
    assert jnp.allclose(W2, out_ref[:, 1:2], atol=1e-5, rtol=1e-5)
    assert jnp.allclose(b, out_ref[:, 2:3], atol=1e-5, rtol=1e-5)


if __name__ == "__main__":
    key = jax.random.PRNGKey(0)
    k_small, k_big, k_param = jax.random.split(key, 3)
    params = _init_params(k_param)

    # Small batch of 2D boundary points (single tile, single chunk).
    _check(8, k_small, params)
    # Larger ragged batch: exercises a 2-step parallel grid, multi-chunk inner
    # loop, and tail padding / unpadding.
    _check(3000, k_big, params)

    print("KERNEL_OK")
</pallas_src>

<mosaic_0001>
module attributes {stable_mosaic.version = 11 : i64} {
  func.func @_meta_mlp_kernel(%arg0: i32, %arg1: memref<2x128xf32, #tpu.memory_space<vmem>>, %arg2: memref<32x2xf32, #tpu.memory_space<vmem>>, %arg3: memref<32x1xf32, #tpu.memory_space<vmem>>, %arg4: memref<32x3xf32, #tpu.memory_space<vmem>>, %arg5: memref<3x1xf32, #tpu.memory_space<vmem>>, %arg6: memref<3x128xf32, #tpu.memory_space<vmem>>) attributes {dimension_semantics = [#tpu.dimension_semantics<parallel>], iteration_bounds = array<i64: 1>, scalar_prefetch = 0 : i64, scratch_operands = 0 : i64, tpu.core_type = #tpu.core_type<tc>, window_params = [{transform_indices = @transform_0, window_bounds = array<i64: 2, 128>}, {pipeline_mode = #tpu.pipeline_mode<synchronous>, transform_indices = @transform_1, window_bounds = array<i64: 32, 2>}, {pipeline_mode = #tpu.pipeline_mode<synchronous>, transform_indices = @transform_2, window_bounds = array<i64: 32, 1>}, {pipeline_mode = #tpu.pipeline_mode<synchronous>, transform_indices = @transform_3, window_bounds = array<i64: 32, 3>}, {pipeline_mode = #tpu.pipeline_mode<synchronous>, transform_indices = @transform_4, window_bounds = array<i64: 3, 1>}, {transform_indices = @transform_5, window_bounds = array<i64: 3, 128>}]} {
    %c0 = arith.constant 0 : index
    %c0_0 = arith.constant 0 : index
    %0 = vector.load %arg2[%c0, %c0_0] : memref<32x2xf32, #tpu.memory_space<vmem>>, vector<32x1xf32>
    %c0_1 = arith.constant 0 : index
    %c1 = arith.constant 1 : index
    %1 = vector.load %arg2[%c0_1, %c1] : memref<32x2xf32, #tpu.memory_space<vmem>>, vector<32x1xf32>
    %c0_2 = arith.constant 0 : index
    %c0_3 = arith.constant 0 : index
    %2 = vector.load %arg3[%c0_2, %c0_3] : memref<32x1xf32, #tpu.memory_space<vmem>>, vector<32x1xf32>
    %c0_4 = arith.constant 0 : index
    %c0_5 = arith.constant 0 : index
    %3 = vector.load %arg4[%c0_4, %c0_5] : memref<32x3xf32, #tpu.memory_space<vmem>>, vector<32x1xf32>
    %c0_6 = arith.constant 0 : index
    %c1_7 = arith.constant 1 : index
    %4 = vector.load %arg4[%c0_6, %c1_7] : memref<32x3xf32, #tpu.memory_space<vmem>>, vector<32x1xf32>
    %c0_8 = arith.constant 0 : index
    %c2 = arith.constant 2 : index
    %5 = vector.load %arg4[%c0_8, %c2] : memref<32x3xf32, #tpu.memory_space<vmem>>, vector<32x1xf32>
    %c0_9 = arith.constant 0 : index
    %c0_10 = arith.constant 0 : index
    %6 = vector.load %arg5[%c0_9, %c0_10] : memref<3x1xf32, #tpu.memory_space<vmem>>, vector<3x1xf32>
    %c0_11 = arith.constant 0 : index
    %c0_12 = arith.constant 0 : index
    %7 = vector.load %arg1[%c0_11, %c0_12] : memref<2x128xf32, #tpu.memory_space<vmem>>, vector<1x128xf32>
    %c1_13 = arith.constant 1 : index
    %c0_14 = arith.constant 0 : index
    %8 = vector.load %arg1[%c1_13, %c0_14] : memref<2x128xf32, #tpu.memory_space<vmem>>, vector<1x128xf32>
    %9 = vector.broadcast %0 : vector<32x1xf32> to vector<32x128xf32>
    %10 = vector.broadcast %7 : vector<1x128xf32> to vector<32x128xf32>
    %11 = arith.mulf %9, %10 : vector<32x128xf32>
    %12 = vector.broadcast %1 : vector<32x1xf32> to vector<32x128xf32>
    %13 = vector.broadcast %8 : vector<1x128xf32> to vector<32x128xf32>
    %14 = arith.mulf %12, %13 : vector<32x128xf32>
    %15 = arith.addf %11, %14 : vector<32x128xf32>
    %16 = vector.broadcast %2 : vector<32x1xf32> to vector<32x128xf32>
    %17 = arith.addf %15, %16 : vector<32x128xf32>
    %cst = arith.constant 0.000000e+00 : f32
    %18 = vector.broadcast %cst : f32 to vector<32x128xf32>
    %19 = arith.maximumf %17, %18 : vector<32x128xf32>
    %20 = vector.broadcast %3 : vector<32x1xf32> to vector<32x128xf32>
    %21 = arith.mulf %20, %19 : vector<32x128xf32>
    %cst_15 = arith.constant dense<0.000000e+00> : vector<128xf32>
    %22 = vector.multi_reduction <add>, %21, %cst_15 [0] : vector<32x128xf32> to vector<128xf32>
    %23 = vector.shape_cast %22 : vector<128xf32> to vector<1x128xf32>
    %24 = vector.extract_strided_slice %6 {offsets = [0, 0], sizes = [1, 1], strides = [1, 1]} : vector<3x1xf32> to vector<1x1xf32>
    %25 = vector.broadcast %24 : vector<1x1xf32> to vector<1x128xf32>
    %26 = arith.addf %23, %25 : vector<1x128xf32>
    %27 = vector.broadcast %4 : vector<32x1xf32> to vector<32x128xf32>
    %28 = arith.mulf %27, %19 : vector<32x128xf32>
    %cst_16 = arith.constant dense<0.000000e+00> : vector<128xf32>
    %29 = vector.multi_reduction <add>, %28, %cst_16 [0] : vector<32x128xf32> to vector<128xf32>
    %30 = vector.shape_cast %29 : vector<128xf32> to vector<1x128xf32>
    %31 = vector.extract_strided_slice %6 {offsets = [1, 0], sizes = [1, 1], strides = [1, 1]} : vector<3x1xf32> to vector<1x1xf32>
    %32 = vector.broadcast %31 : vector<1x1xf32> to vector<1x128xf32>
    %33 = arith.addf %30, %32 : vector<1x128xf32>
    %34 = vector.broadcast %5 : vector<32x1xf32> to vector<32x128xf32>
    %35 = arith.mulf %34, %19 : vector<32x128xf32>
    %cst_17 = arith.constant dense<0.000000e+00> : vector<128xf32>
    %36 = vector.multi_reduction <add>, %35, %cst_17 [0] : vector<32x128xf32> to vector<128xf32>
    %37 = vector.shape_cast %36 : vector<128xf32> to vector<1x128xf32>
    %38 = vector.extract_strided_slice %6 {offsets = [2, 0], sizes = [1, 1], strides = [1, 1]} : vector<3x1xf32> to vector<1x1xf32>
    %39 = vector.broadcast %38 : vector<1x1xf32> to vector<1x128xf32>
    %40 = arith.addf %37, %39 : vector<1x128xf32>
    %c0_18 = arith.constant 0 : index
    %c0_19 = arith.constant 0 : index
    %41 = vector.load %arg6[%c0_18, %c0_19] : memref<3x128xf32, #tpu.memory_space<vmem>>, vector<1x128xf32>
    tpu.vector_store %arg6[%c0_18, %c0_19], %26 {strides = array<i32>} : memref<3x128xf32, #tpu.memory_space<vmem>>, vector<1x128xf32>,
    %c1_20 = arith.constant 1 : index
    %c0_21 = arith.constant 0 : index
    %42 = vector.load %arg6[%c1_20, %c0_21] : memref<3x128xf32, #tpu.memory_space<vmem>>, vector<1x128xf32>
    tpu.vector_store %arg6[%c1_20, %c0_21], %33 {strides = array<i32>} : memref<3x128xf32, #tpu.memory_space<vmem>>, vector<1x128xf32>,
    %c2_22 = arith.constant 2 : index
    %c0_23 = arith.constant 0 : index
    %43 = vector.load %arg6[%c2_22, %c0_23] : memref<3x128xf32, #tpu.memory_space<vmem>>, vector<1x128xf32>
    tpu.vector_store %arg6[%c2_22, %c0_23], %40 {strides = array<i32>} : memref<3x128xf32, #tpu.memory_space<vmem>>, vector<1x128xf32>,
    return
  }
  func.func @transform_0(%arg0: i32) -> (i32, i32) {
    %c0_i32 = arith.constant 0 : i32
    %c0_i32_0 = arith.constant 0 : i32
    return %c0_i32, %arg0 : i32, i32
  }
  func.func @transform_1(%arg0: i32) -> (i32, i32) {
    %c0_i32 = arith.constant 0 : i32
    %c0_i32_0 = arith.constant 0 : i32
    %c0_i32_1 = arith.constant 0 : i32
    return %c0_i32, %c0_i32_0 : i32, i32
  }
  func.func @transform_2(%arg0: i32) -> (i32, i32) {
    %c0_i32 = arith.constant 0 : i32
    %c0_i32_0 = arith.constant 0 : i32
    %c0_i32_1 = arith.constant 0 : i32
    return %c0_i32, %c0_i32_0 : i32, i32
  }
  func.func @transform_3(%arg0: i32) -> (i32, i32) {
    %c0_i32 = arith.constant 0 : i32
    %c0_i32_0 = arith.constant 0 : i32
    %c0_i32_1 = arith.constant 0 : i32
    return %c0_i32, %c0_i32_0 : i32, i32
  }
  func.func @transform_4(%arg0: i32) -> (i32, i32) {
    %c0_i32 = arith.constant 0 : i32
    %c0_i32_0 = arith.constant 0 : i32
    %c0_i32_1 = arith.constant 0 : i32
    return %c0_i32, %c0_i32_0 : i32, i32
  }
  func.func @transform_5(%arg0: i32) -> (i32, i32) {
    %c0_i32 = arith.constant 0 : i32
    %c0_i32_0 = arith.constant 0 : i32
    return %c0_i32, %arg0 : i32, i32
  }
}

</mosaic_0001>

<llo_original>
// kernel: meta_model_forward.1
$region0: #{meta_model_forward.1}
  #allocation0 [shape = 'u32[]', space=smem, size = 0x4, offset = 0x4, fixed_abs, tag = 'smem constant byte address 0x4 - core index']
  #allocation1 [shape = 'u32[144,128]{1,0:T(1,128)}', space=vmem, size = 0x12000, scoped, tag = 'internal scratch']
  %s0 = inlined_call_operand.vmem [shape: f32[2,128], index: 0, kind: input, shape index: {}]
  %s1 = inlined_call_operand.vmem [shape: f32[32,2], index: 1, kind: input, shape index: {}]
  %s2 = inlined_call_operand.vmem [shape: f32[32,1], index: 2, kind: input, shape index: {}]
  %s3 = inlined_call_operand.vmem [shape: f32[32,3], index: 3, kind: input, shape index: {}]
  %s4 = inlined_call_operand.vmem [shape: f32[3,1], index: 4, kind: input, shape index: {}]
  %s5 = inlined_call_operand.vmem [shape: f32[3,128], index: 5, kind: output, shape index: {}]
  %s6 = sld [smem:[#allocation0]]
  $region30: #{meta_model_forward.1} parent=0
    _
  %s8 = ssub.s32 1, %s6
  %s9 = scalar_select 0, %s8, %s6
  // Predicated region
  $region2: #{meta_model_forward.1} parent=0 // pred_check
    _
  $region3: #{meta_model_forward.1} parent=0 // pred_check_branch
    %11 = sbr.rel (0) target = $region5
  $region4: #{meta_model_forward.1} parent=0 // pred_region
    _
  $region5: #{meta_model_forward.1} parent=0 // pred_fallthru
    _
  // Predicated region
  $region6: #{meta_model_forward.1} parent=0 // pred_check
    _
  $region7: #{meta_model_forward.1} parent=0 // pred_check_branch
    %13 = sbr.rel (0) target = $region9
  $region8: #{meta_model_forward.1} parent=0 // pred_region
    _
  $region9: #{meta_model_forward.1} parent=0 // pred_fallthru
    _
  // Predicated region
  $region10: #{meta_model_forward.1} parent=0 // pred_check
    _
  $region11: #{meta_model_forward.1} parent=0 // pred_check_branch
    %15 = sbr.rel (0) target = $region13
  $region12: #{meta_model_forward.1} parent=0 // pred_region
    _
  $region13: #{meta_model_forward.1} parent=0 // pred_fallthru
    _
  // Predicated region
  $region14: #{meta_model_forward.1} parent=0 // pred_check
    _
  $region15: #{meta_model_forward.1} parent=0 // pred_check_branch
    %17 = sbr.rel (0) target = $region17
  $region16: #{meta_model_forward.1} parent=0 // pred_region
    _
  $region17: #{meta_model_forward.1} parent=0 // pred_fallthru
    _
  // Predicated region
  $region18: #{meta_model_forward.1} parent=0 // pred_check
    _
  $region19: #{meta_model_forward.1} parent=0 // pred_check_branch
    %19 = sbr.rel (0) target = $region21
  $region20: #{meta_model_forward.1} parent=0 // pred_region
    _
  $region21: #{meta_model_forward.1} parent=0 // pred_fallthru
    _
  %v20 = vld [vmem:[%s1] sm:$0xff]
  %v21 = vld [vmem:[%s1 + $0x8] sm:$0xff]
  %v22 = vld [vmem:[%s1 + $0x10] sm:$0xff]
  %v23 = vld [vmem:[%s1 + $0x18] sm:$0xff]
  %v24 = vld [vmem:[%s2] sm:$0xff]
  %v25 = vld [vmem:[%s2 + $0x8] sm:$0xff]
  %v26 = vld [vmem:[%s2 + $0x10] sm:$0xff]
  %v27 = vld [vmem:[%s2 + $0x18] sm:$0xff]
  %v28 = vld [vmem:[%s3] sm:$0xff]
  %v29 = vld [vmem:[%s3 + $0x8] sm:$0xff]
  %v30 = vld [vmem:[%s3 + $0x10] sm:$0xff]
  %v31 = vld [vmem:[%s3 + $0x18] sm:$0xff]
  %v32 = vld [vmem:[%s4] sm:$0x7]
  %v33 = vld [vmem:[%s0] sm:$0x1]
  %v34 = vld [vmem:[%s0 + $0x1] sm:$0x1]
  %36 = vset.pattern.permute.xlu0 0
  %37 = vperm.xlu0 %36, %v20
  %v38 = vpop.permute.xlu0 %37
  %41 = vset.pattern.permute.xlu0 0
  %42 = vperm.xlu0 %41, %v21
  %v43 = vpop.permute.xlu0 %42
  %46 = vset.pattern.permute.xlu0 0
  %47 = vperm.xlu0 %46, %v22
  %v48 = vpop.permute.xlu0 %47
  %51 = vset.pattern.permute.xlu0 0
  %52 = vperm.xlu0 %51, %v23
  %v53 = vpop.permute.xlu0 %52
  %v55 = vlaneseq
  %v56 = vshrl.u32 %v55, 7
  %v57 = vsub.s32 0, %v56
  %v58 = vrot.slane %v33, %v57
  %v59 = vmul.f32 %v38, %v58
  %v60 = vmul.f32 %v43, %v58
  %v61 = vmul.f32 %v48, %v58
  %v62 = vmul.f32 %v53, %v58
  %63 = vset.pattern.permute.xlu0 1
  %64 = vperm.xlu0 %63, %v20
  %v65 = vpop.permute.xlu0 %64
  %67 = vset.pattern.permute.xlu0 1
  %68 = vperm.xlu0 %67, %v21
  %v69 = vpop.permute.xlu0 %68
  %71 = vset.pattern.permute.xlu0 1
  %72 = vperm.xlu0 %71, %v22
  %v73 = vpop.permute.xlu0 %72
  %75 = vset.pattern.permute.xlu0 1
  %76 = vperm.xlu0 %75, %v23
  %v77 = vpop.permute.xlu0 %76
  %v79 = vlaneseq
  %v80 = vshrl.u32 %v79, 7
  %v81 = vsub.s32 0, %v80
  %v82 = vrot.slane %v34, %v81
  %v83 = vmul.f32 %v65, %v82
  %v84 = vmul.f32 %v69, %v82
  %v85 = vmul.f32 %v73, %v82
  %v86 = vmul.f32 %v77, %v82
  %v87 = vadd.f32 %v59, %v83
  %v88 = vadd.f32 %v60, %v84
  %v89 = vadd.f32 %v61, %v85
  %v90 = vadd.f32 %v62, %v86
  %92 = vset.pattern.permute.xlu0 0
  %93 = vperm.xlu0 %92, %v24
  %v94 = vpop.permute.xlu0 %93
  %97 = vset.pattern.permute.xlu0 0
  %98 = vperm.xlu0 %97, %v25
  %v99 = vpop.permute.xlu0 %98
  %102 = vset.pattern.permute.xlu0 0
  %103 = vperm.xlu0 %102, %v26
  %v104 = vpop.permute.xlu0 %103
  %107 = vset.pattern.permute.xlu0 0
  %108 = vperm.xlu0 %107, %v27
  %v109 = vpop.permute.xlu0 %108
  %v111 = vadd.f32 %v87, %v94
  %v112 = vadd.f32 %v88, %v99
  %v113 = vadd.f32 %v89, %v104
  %v114 = vadd.f32 %v90, %v109
  %v115 = vmax.f32 %v111, 0.0
  %v116 = vmax.f32 %v112, 0.0
  %v117 = vmax.f32 %v113, 0.0
  %v118 = vmax.f32 %v114, 0.0
  %120 = vset.pattern.permute.xlu0 0
  %121 = vperm.xlu0 %120, %v28
  %v122 = vpop.permute.xlu0 %121
  %125 = vset.pattern.permute.xlu0 0
  %126 = vperm.xlu0 %125, %v29
  %v127 = vpop.permute.xlu0 %126
  %130 = vset.pattern.permute.xlu0 0
  %131 = vperm.xlu0 %130, %v30
  %v132 = vpop.permute.xlu0 %131
  %135 = vset.pattern.permute.xlu0 0
  %136 = vperm.xlu0 %135, %v31
  %v137 = vpop.permute.xlu0 %136
  %v139 = vmul.f32 %v122, %v115
  %v140 = vmul.f32 %v127, %v116
  %v141 = vmul.f32 %v132, %v117
  %v142 = vmul.f32 %v137, %v118
  %v143 = vadd.f32 %v139, %v140
  %v144 = vadd.f32 %v143, %v141
  %v145 = vadd.f32 %v144, %v142
  %v146 = vrot.slane %v145, 4
  %v147 = vadd.f32 %v145, %v146
  %v148 = vrot.slane %v147, 2
  %v149 = vadd.f32 %v147, %v148
  %v150 = vrot.slane %v149, 1
  %v151 = vadd.f32 %v149, %v150
  %153 = vset.pattern.permute.xlu0 0
  %154 = vperm.xlu0 %153, %v32
  %v155 = vpop.permute.xlu0 %154
  %v157 = vadd.f32 %v151, %v155
  %158 = vset.pattern.permute.xlu0 1
  %159 = vperm.xlu0 %158, %v28
  %v160 = vpop.permute.xlu0 %159
  %162 = vset.pattern.permute.xlu0 1
  %163 = vperm.xlu0 %162, %v29
  %v164 = vpop.permute.xlu0 %163
  %166 = vset.pattern.permute.xlu0 1
  %167 = vperm.xlu0 %166, %v30
  %v168 = vpop.permute.xlu0 %167
  %170 = vset.pattern.permute.xlu0 1
  %171 = vperm.xlu0 %170, %v31
  %v172 = vpop.permute.xlu0 %171
  %v174 = vmul.f32 %v160, %v115
  %v175 = vmul.f32 %v164, %v116
  %v176 = vmul.f32 %v168, %v117
  %v177 = vmul.f32 %v172, %v118
  %v178 = vadd.f32 %v174, %v175
  %v179 = vadd.f32 %v178, %v176
  %v180 = vadd.f32 %v179, %v177
  %v181 = vrot.slane %v180, 4
  %v182 = vadd.f32 %v180, %v181
  %v183 = vrot.slane %v182, 2
  %v184 = vadd.f32 %v182, %v183
  %v185 = vrot.slane %v184, 1
  %v186 = vadd.f32 %v184, %v185
  %v187 = vadd.f32 %v186, %v155
  %188 = vset.pattern.permute.xlu0 2
  %189 = vperm.xlu0 %188, %v28
  %v190 = vpop.permute.xlu0 %189
  %192 = vset.pattern.permute.xlu0 2
  %193 = vperm.xlu0 %192, %v29
  %v194 = vpop.permute.xlu0 %193
  %196 = vset.pattern.permute.xlu0 2
  %197 = vperm.xlu0 %196, %v30
  %v198 = vpop.permute.xlu0 %197
  %200 = vset.pattern.permute.xlu0 2
  %201 = vperm.xlu0 %200, %v31
  %v202 = vpop.permute.xlu0 %201
  %v204 = vmul.f32 %v190, %v115
  %v205 = vmul.f32 %v194, %v116
  %v206 = vmul.f32 %v198, %v117
  %v207 = vmul.f32 %v202, %v118
  %v208 = vadd.f32 %v204, %v205
  %v209 = vadd.f32 %v208, %v206
  %v210 = vadd.f32 %v209, %v207
  %v211 = vrot.slane %v210, 4
  %v212 = vadd.f32 %v210, %v211
  %v213 = vrot.slane %v212, 2
  %v214 = vadd.f32 %v212, %v213
  %v215 = vrot.slane %v214, 1
  %v216 = vadd.f32 %v214, %v215
  %v217 = vadd.f32 %v216, %v155
  %218 = vst [vmem:[%s5] sm:$0x1] %v157
  %219 = vst [vmem:[%s5] sm:$0x2] %v187
  %220 = vst [vmem:[%s5] sm:$0x4] %v217
  // Predicated region
  $region22: #{meta_model_forward.1} parent=0 // pred_check
    _
  $region23: #{meta_model_forward.1} parent=0 // pred_check_branch
    %222 = sbr.rel (0) target = $region25
  $region24: #{meta_model_forward.1} parent=0 // pred_region
    _
  $region25: #{meta_model_forward.1} parent=0 // pred_fallthru
    _
  // Predicated region
  $region26: #{meta_model_forward.1} parent=0 // pred_check
    _
  $region27: #{meta_model_forward.1} parent=0 // pred_check_branch
    %224 = sbr.rel (0) target = $region29
  $region28: #{meta_model_forward.1} parent=0 // pred_region
    _
  $region29: #{meta_model_forward.1} parent=0 // pred_fallthru
    _

</llo_original>
